<compile_context>
chip_gen: v7x
topology: tpu7x:2x2x1
jax: 0.10.0
libtpu: 0.0.40
codegen_flags: <defaults>
</compile_context>

<pallas_src>
import jax
import jax.numpy as jnp
from jax.experimental import pallas as pl
from jax.experimental.pallas import tpu as pltpu


def _fuzzification_kernel(x_ref, a_ref, k_ref, o_ref):
    """One batch tile.

    x_ref: (TB, K)   folded crisp inputs, last column is ones (K = G*V + 1)
    a_ref: (K, L)    affine expansion matrix: one-hot lane expansion rows + (-c) row
    k_ref: (1, L)    precomputed -1/(2*sigma^2) (0 in padded lanes)
    o_ref: (TB, L)   membership degrees (lane-dense, L % 128 == 0)
    """
    # MXU does the lane expansion AND the (x - c) subtraction in one shot.
    # HIGHEST keeps the f32 operands exact through the bf16-pass MXU path.
    d = jnp.dot(x_ref[...], a_ref[...],
                preferred_element_type=jnp.float32,
                precision=jax.lax.Precision.HIGHEST)
    # Gaussian MF: exp(-(x - c)^2 / (2 sigma^2)).  VPU: 2 ops/elem, EUP: exp.
    o_ref[...] = jnp.exp(d * d * k_ref[...]).astype(o_ref.dtype)


def _round_up(a, b):
    return ((a + b - 1) // b) * b


def _pick_batch_fold(batch, n_vars, max_mfs):
    """Pick G (batch rows folded per kernel row) minimizing lane+batch padding waste."""
    vm = n_vars * max_mfs
    g_max = max(1, min(batch, 128 // max(1, n_vars)))  # keep matmul K = G*V + 1 <= 129
    best_g, best_score = 1, None
    for g in range(1, g_max + 1):
        lanes = _round_up(g * vm, 128)
        lane_waste = (lanes - g * vm) / lanes
        b_pad = _round_up(batch, g)
        batch_waste = (b_pad - batch) / b_pad
        score = lane_waste + batch_waste
        if best_score is None or score < best_score - 1e-12:
            best_g, best_score = g, score
        if score == 0.0:
            break
    return best_g


def fuzzification_layer(x, centers, sigmas, *, tile_rows=None, out_dtype=jnp.float32):
    """x: (B, V); centers/sigmas: (V, M)  ->  (B, V, M) membership degrees."""
    x = x.astype(jnp.float32)
    centers = centers.astype(jnp.float32)
    sigmas = sigmas.astype(jnp.float32)

    B, V = x.shape
    Vc, M = centers.shape
    assert V == Vc, "x.shape[1] must equal the number of fuzzy variables"
    VM = V * M

    # Host-side precompute: -1/(2 sigma^2) (keeps the kernel EUP exp-only).
    neg_half_inv_var = -0.5 / (sigmas * sigmas)

    G = _pick_batch_fold(B, V, M)
    n_cols = G * V
    GVM = G * VM
    lanes = _round_up(GVM, 128)
    lane_pad = lanes - GVM
    K = n_cols + 1

    # Fold G consecutive batch rows per kernel row (pad batch as needed).
    Bf = -(-B // G)
    B_pad = Bf * G
    x_pad = jnp.pad(x, ((0, B_pad - B), (0, 0)))
    x_f = x_pad.reshape(Bf, n_cols)
    x_aug = jnp.concatenate([x_f, jnp.ones((Bf, 1), jnp.float32)], axis=1)  # (Bf, K)

    # Affine expansion matrix: lane l = (g*V + v)*M + m.
    expand = jnp.repeat(jnp.eye(n_cols, dtype=jnp.float32), M, axis=1)      # (n_cols, GVM)
    neg_c = -jnp.tile(centers.reshape(1, VM), (1, G))                       # (1, GVM)
    a_mat = jnp.concatenate([expand, neg_c], axis=0)                        # (K, GVM)
    a_mat = jnp.pad(a_mat, ((0, 0), (0, lane_pad)))                         # (K, lanes)

    k_f = jnp.tile(neg_half_inv_var.reshape(1, VM), (1, G))                 # (1, GVM)
    k_f = jnp.pad(k_f, ((0, 0), (0, lane_pad)))                             # (1, lanes); 0 pad -> exp(0)=1 (discarded)

    out_itemsize = jnp.dtype(out_dtype).itemsize

    if tile_rows is None:
        # ~4 MiB output tile: big enough to amortize per-step overhead, small
        # enough for >= 2 double-buffered tiles inside scoped VMEM everywhere.
        tile_rows = max(8, (4 * 1024 * 1024) // (lanes * out_itemsize))
        # Keep at least 2 grid steps when the batch allows (v7x: 2 TensorCores).
        if Bf > 8:
            half = _round_up(-(-Bf // 2), 8)
            tile_rows = min(tile_rows, half)
    if tile_rows >= Bf:
        tile_rows = Bf
    else:
        tile_rows = max(8, (tile_rows // 8) * 8)
    grid = (pl.cdiv(Bf, tile_rows),)

    # Size the VMEM request from the actual working set (+50% headroom).
    tile_in_bytes = tile_rows * K * 4
    tile_out_bytes = tile_rows * lanes * out_itemsize
    const_bytes = (K + 1) * lanes * 4
    vmem_need = 2 * (tile_in_bytes + tile_out_bytes) + 2 * const_bytes
    vmem_limit = min(max(int(vmem_need * 1.5) + (2 << 20), 8 << 20), 48 << 20)

    in_bytes = 4 * (x_aug.size + a_mat.size + k_f.size)
    out_bytes = Bf * lanes * out_itemsize

    out2d = pl.pallas_call(
        _fuzzification_kernel,
        out_shape=jax.ShapeDtypeStruct((Bf, lanes), out_dtype),
        grid=grid,
        in_specs=[
            pl.BlockSpec((tile_rows, K), lambda i: (i, 0)),
            pl.BlockSpec((K, lanes), lambda i: (0, 0)),
            pl.BlockSpec((1, lanes), lambda i: (0, 0)),
        ],
        out_specs=pl.BlockSpec((tile_rows, lanes), lambda i: (i, 0)),
        compiler_params=pltpu.CompilerParams(
            dimension_semantics=("parallel",),
            vmem_limit_bytes=vmem_limit,
        ),
        cost_estimate=pl.CostEstimate(
            flops=Bf * lanes * (2 * K + 2),
            transcendentals=Bf * lanes,
            bytes_accessed=in_bytes + out_bytes,
        ),
    )(x_aug, a_mat, k_f)

    # Drop lane padding, unfold the batch, drop batch padding (all cheap XLA ops).
    out = out2d[:, :GVM].reshape(B_pad, V, M)[:B]
    return out


def fuzzification_layer_ref(x, centers, sigmas):
    # Pure-JAX reference (mirrors the per-variable torch loop + stack).
    outs = []
    for i in range(x.shape[1]):
        xi = x[:, i:i + 1]                                   # (B, 1)
        mu = jnp.exp(-((xi - centers[i][None, :]) ** 2)
                     / (2.0 * sigmas[i][None, :] ** 2))      # (B, M)
        outs.append(mu)
    return jnp.stack(outs, axis=1)                           # (B, V, M)


if __name__ == "__main__":
    key = jax.random.PRNGKey(0)

    def make_case(k, batch, n_vars, max_mfs):
        k_x, k_c, k_s = jax.random.split(k, 3)
        xv = jax.random.normal(k_x, (batch, n_vars), dtype=jnp.float32)
        cv = jax.random.normal(k_c, (n_vars, max_mfs), dtype=jnp.float32)
        sv = 0.5 + jax.random.uniform(k_s, (n_vars, max_mfs), dtype=jnp.float32)
        return xv, cv, sv

    cases = [
        dict(batch=8, n_vars=4, max_mfs=8, tile_rows=None),   # fold G=4 -> 128 lanes exactly
        dict(batch=64, n_vars=4, max_mfs=8, tile_rows=8),     # multi-step grid
        dict(batch=24, n_vars=3, max_mfs=5, tile_rows=None),  # lane padding path (V*M=15)
        dict(batch=88, n_vars=4, max_mfs=8, tile_rows=8),     # padded final grid block
        dict(batch=7, n_vars=3, max_mfs=5, tile_rows=None),   # batch padding path
    ]
    keys = jax.random.split(key, len(cases))
    for k, cfg in zip(keys, cases):
        x, centers, sigmas = make_case(k, cfg["batch"], cfg["n_vars"], cfg["max_mfs"])
        out = fuzzification_layer(x, centers, sigmas, tile_rows=cfg["tile_rows"])
        out = jax.block_until_ready(out)
        ref = fuzzification_layer_ref(x, centers, sigmas)
        assert out.shape == (cfg["batch"], cfg["n_vars"], cfg["max_mfs"])
        assert jnp.allclose(out, ref, atol=1e-5, rtol=1e-5), cfg

    print("KERNEL_OK")
</pallas_src>

<mosaic_0001>
module attributes {stable_mosaic.version = 11 : i64} {
  func.func @_fuzzification_kernel(%arg0: i32, %arg1: memref<2x17xf32, #tpu.memory_space<vmem>>, %arg2: memref<17x128xf32, #tpu.memory_space<vmem>>, %arg3: memref<1x128xf32, #tpu.memory_space<vmem>>, %arg4: memref<2x128xf32, #tpu.memory_space<vmem>>) attributes {dimension_semantics = [#tpu.dimension_semantics<parallel>], iteration_bounds = array<i64: 1>, scalar_prefetch = 0 : i64, scratch_operands = 0 : i64, tpu.core_type = #tpu.core_type<tc>, window_params = [{transform_indices = @transform_0, window_bounds = array<i64: 2, 17>}, {pipeline_mode = #tpu.pipeline_mode<synchronous>, transform_indices = @transform_1, window_bounds = array<i64: 17, 128>}, {pipeline_mode = #tpu.pipeline_mode<synchronous>, transform_indices = @transform_2, window_bounds = array<i64: 1, 128>}, {transform_indices = @transform_3, window_bounds = array<i64: 2, 128>}]} {
    %c0 = arith.constant 0 : index
    %c0_0 = arith.constant 0 : index
    %0 = vector.load %arg1[%c0, %c0_0] : memref<2x17xf32, #tpu.memory_space<vmem>>, vector<2x17xf32>
    %c0_1 = arith.constant 0 : index
    %c0_2 = arith.constant 0 : index
    %1 = vector.load %arg2[%c0_1, %c0_2] : memref<17x128xf32, #tpu.memory_space<vmem>>, vector<17x128xf32>
    %cst = arith.constant dense<0.000000e+00> : vector<2x128xf32>
    %2 = tpu.matmul %0, %1, %cst {dimension_numbers = #tpu.dot_dimension_numbers<[1], [0], [0], [1], [0, 0, 1, 1], [], []>, precision = #tpu.contract_precision<fp32>} : vector<2x17xf32>, vector<17x128xf32>, vector<2x128xf32> -> vector<2x128xf32>
    %3 = arith.mulf %2, %2 : vector<2x128xf32>
    %c0_3 = arith.constant 0 : index
    %c0_4 = arith.constant 0 : index
    %4 = vector.load %arg3[%c0_3, %c0_4] : memref<1x128xf32, #tpu.memory_space<vmem>>, vector<1x128xf32>
    %5 = vector.broadcast %4 : vector<1x128xf32> to vector<2x128xf32>
    %6 = arith.mulf %3, %5 : vector<2x128xf32>
    %7 = math.exp %6 : vector<2x128xf32>
    %c0_5 = arith.constant 0 : index
    %c0_6 = arith.constant 0 : index
    %8 = vector.load %arg4[%c0_5, %c0_6] : memref<2x128xf32, #tpu.memory_space<vmem>>, vector<2x128xf32>
    tpu.vector_store %arg4[%c0_5, %c0_6], %7 {strides = array<i32>} : memref<2x128xf32, #tpu.memory_space<vmem>>, vector<2x128xf32>,
    return
  }
  func.func @transform_0(%arg0: i32) -> (i32, i32) {
    %c0_i32 = arith.constant 0 : i32
    %c0_i32_0 = arith.constant 0 : i32
    return %arg0, %c0_i32 : i32, i32
  }
  func.func @transform_1(%arg0: i32) -> (i32, i32) {
    %c0_i32 = arith.constant 0 : i32
    %c0_i32_0 = arith.constant 0 : i32
    %c0_i32_1 = arith.constant 0 : i32
    return %c0_i32, %c0_i32_0 : i32, i32
  }
  func.func @transform_2(%arg0: i32) -> (i32, i32) {
    %c0_i32 = arith.constant 0 : i32
    %c0_i32_0 = arith.constant 0 : i32
    %c0_i32_1 = arith.constant 0 : i32
    return %c0_i32, %c0_i32_0 : i32, i32
  }
  func.func @transform_3(%arg0: i32) -> (i32, i32) {
    %c0_i32 = arith.constant 0 : i32
    %c0_i32_0 = arith.constant 0 : i32
    return %arg0, %c0_i32 : i32, i32
  }
}

</mosaic_0001>

<llo_original>
// kernel: tpu_custom_call.1
$region0: #{tpu_custom_call.1}
  #allocation0 [shape = 'u32[]', space=smem, size = 0x4, offset = 0x4, fixed_abs, tag = 'smem constant byte address 0x4 - core index']
  #allocation1 [shape = 'u32[144,128]{1,0:T(1,128)}', space=vmem, size = 0x12000, scoped, tag = 'internal scratch']
  %s0 = inlined_call_operand.hbm [shape: f32[2,17], index: 0, kind: input, shape index: {}]
  %s1 = inlined_call_operand.hbm [shape: f32[17,128], index: 1, kind: input, shape index: {}]
  %s2 = inlined_call_operand.vmem [shape: f32[1,128], index: 2, kind: input, shape index: {}]
  %s3 = inlined_call_operand.hbm [shape: f32[2,128], index: 3, kind: output, shape index: {}]
  %s4 = sld [smem:[#allocation0]]
  $region30: #{tpu_custom_call.1} parent=0
    _
  %s6 = ssub.s32 1, %s4
  %s7 = scalar_select 0, %s6, %s4
  $region1: #{tpu_custom_call.1} parent=0
    #allocation2 [shape = 'u8[1024]{0}', space=vmem, size = 0x400, scoped, tag = 'input window, operand 0, single buffered']
    #allocation3 [shape = 's32[1]{0}', space=sflag, size = 0x4, scoped, tag = 'scoped memory for tpu_custom_call.1']
    #allocation4 [shape = 's32[1]{0}', space=sflag, size = 0x4, scoped, tag = 'scoped memory for tpu_custom_call.1']
    #allocation5 [shape = 'u8[12288]{0}', space=vmem, size = 0x3000, scoped, tag = 'input window, operand 1, single buffered']
    #allocation6 [shape = 's32[1]{0}', space=sflag, size = 0x4, scoped, tag = 'scoped memory for tpu_custom_call.1']
    #allocation7 [shape = 'u8[1024]{0}', space=vmem, size = 0x400, scoped, tag = 'output window, operand 0, single buffered']
    %8 = vsyncpa [#allocation3], 0
    %9 = vsyncpa [#allocation6], 0
    %10 = vsyncpa [#allocation4], 0
    // Predicated region
    $region2: #{tpu_custom_call.1} parent=1 // pred_check
      _
    $region3: #{tpu_custom_call.1} parent=1 // pred_check_branch
      %12 = sbr.rel (0) target = $region5
    $region4: #{tpu_custom_call.1} parent=1 // pred_region
      %s14 = ssub.s32 32, 32
      %15 = vsyncadd [#allocation3], %s14
      %s17 = sshll.u32 [#allocation2], 4
      %s18 = int_to_ptr.vmem [resolvable:$true] %s17
      %20 = dma.hbm_to_vmem [thread:$0]  %s0, 32, %s18, [#allocation3]
    $region5: #{tpu_custom_call.1} parent=1 // pred_fallthru
      _
    // Predicated region
    $region6: #{tpu_custom_call.1} parent=1 // pred_check
      _
    $region7: #{tpu_custom_call.1} parent=1 // pred_check_branch
      %22 = sbr.rel (0) target = $region9
    $region8: #{tpu_custom_call.1} parent=1 // pred_region
      %s24 = ssub.s32 384, 384
      %25 = vsyncadd [#allocation6], %s24
      %s26 = sshll.u32 [#allocation5], 4
      %s27 = int_to_ptr.vmem [resolvable:$true] %s26
      %32 = dma.hbm_to_vmem [thread:$0]  %s1, 384, %s27, [#allocation6], 128, 128, 8
    $region9: #{tpu_custom_call.1} parent=1 // pred_fallthru
      _
    // Predicated region
    $region10: #{tpu_custom_call.1} parent=1 // pred_check
      _
    $region11: #{tpu_custom_call.1} parent=1 // pred_check_branch
      %34 = sbr.rel (0) target = $region13
    $region12: #{tpu_custom_call.1} parent=1 // pred_region
      _
    $region13: #{tpu_custom_call.1} parent=1 // pred_fallthru
      _
    // Predicated region
    $region14: #{tpu_custom_call.1} parent=1 // pred_check
      _
    $region15: #{tpu_custom_call.1} parent=1 // pred_check_branch
      %36 = sbr.rel (0) target = $region17
    $region16: #{tpu_custom_call.1} parent=1 // pred_region
      %37 = dma.done [#allocation3], 32
    $region17: #{tpu_custom_call.1} parent=1 // pred_fallthru
      _
    // Predicated region
    $region18: #{tpu_custom_call.1} parent=1 // pred_check
      _
    $region19: #{tpu_custom_call.1} parent=1 // pred_check_branch
      %39 = sbr.rel (0) target = $region21
    $region20: #{tpu_custom_call.1} parent=1 // pred_region
      %40 = dma.done [#allocation6], 384
    $region21: #{tpu_custom_call.1} parent=1 // pred_fallthru
      _
    %v41 = vld [vmem:[#allocation2] sm:$0x3]
    %v42 = vld [vmem:[#allocation5] sm:$0xff]
    %v43 = vld [vmem:[#allocation5 + $0x8] sm:$0xff]
    %v44 = vld [vmem:[#allocation5 + $0x10] sm:$0x1]
    %vm45 = vcmask 138240
    %v47 = vsel %vm45, %v41, 0
    %vm49 = vcmask 1040384
    %v51 = vsel %vm49, %v44, 0
    %53 = vmatprep.subr.mxu0 0.0
    %v54 = vand.u32 %v42, 4294901760
    %55 = vmatpush1.msra.mxu0 %v54
    %56 = vmatprep.subr.mxu0 0.0
    %v57 = vand.u32 %v43, 4294901760
    %58 = vmatpush1.msra.mxu0 %v57
    %59 = vmatprep.subr.mxu0 0.0
    %v60 = vand.u32 %v51, 4294901760
    %61 = vmatpush1.msra.mxu0 %v60
    %62 = vmatprep.subr.mxu0 0.0
    %63 = vmatpush1.msra.mxu0 0.0
    %64 = vmatprep.subr.mxu0 0.0
    %65 = vmatpush1.msra.mxu0 0.0
    %66 = vmatprep.subr.mxu0 0.0
    %67 = vmatpush1.msra.mxu0 0.0
    %68 = vmatprep.subr.mxu0 0.0
    %69 = vmatpush1.msra.mxu0 0.0
    %70 = vmatprep.subr.mxu0 0.0
    %71 = vmatpush1.msra.mxu0 0.0
    %72 = vmatprep.subr.mxu0 0.0
    %73 = vmatpush1.msra.mxu0 0.0
    %74 = vmatprep.subr.mxu0 0.0
    %75 = vmatpush1.msra.mxu0 0.0
    %76 = vmatprep.subr.mxu0 0.0
    %77 = vmatpush1.msra.mxu0 0.0
    %78 = vmatprep.subr.mxu0 0.0
    %79 = vmatpush1.msra.mxu0 0.0
    %80 = vmatprep.subr.mxu0 0.0
    %81 = vmatpush1.msra.mxu0 0.0
    %82 = vmatprep.subr.mxu0 0.0
    %83 = vmatpush1.msra.mxu0 0.0
    %84 = vmatprep.subr.mxu0 0.0
    %85 = vmatpush1.msra.mxu0 0.0
    %86 = vmatprep.subr.mxu0 0.0
    %87 = vmatpush1.msra.mxu0 0.0
    %88 = vmatprep.subr.mxu0 0.0
    %89 = vmatpush1.msra.mxu0 0.0
    %90 = vmatprep.subr.mxu0 0.0
    %91 = vmatpush1.msra.mxu0 0.0
    %92 = vmatprep.subr.mxu0 0.0
    %93 = vmatpush1.msra.mxu0 0.0
    %94 = vmatprep.subr.mxu0 0.0
    %95 = vmatpush1.msra.mxu0 0.0
    %96 = vmatprep.subr.mxu0 0.0
    %97 = vmatpush1.msra.mxu0 0.0
    %98 = vmatprep.subr.mxu0 0.0
    %99 = vmatpush1.msra.mxu0 0.0
    %100 = vmatprep.subr.mxu0 0.0
    %101 = vmatpush1.msra.mxu0 0.0
    %102 = vmatprep.subr.mxu0 0.0
    %103 = vmatpush1.msra.mxu0 0.0
    %104 = vmatprep.subr.mxu0 0.0
    %105 = vmatpush1.msra.mxu0 0.0
    %106 = vmatprep.subr.mxu0 0.0
    %107 = vmatpush1.msra.mxu0 0.0
    %108 = vmatprep.subr.mxu0 0.0
    %109 = vmatpush1.msra.mxu0 0.0
    %110 = vmatprep.subr.mxu0 0.0
    %111 = vmatpush1.msra.mxu0 0.0
    %112 = vmatprep.subr.mxu0 0.0
    %113 = vmatpush1.msra.mxu0 0.0
    %114 = vmatprep.subr.mxu0 0.0
    %115 = vmatpush1.msra.mxu0 0.0
    %116 = vmatprep.subr.mxu0 0.0
    %117 = vmatpush1.msra.mxu0 0.0
    %118 = vmatprep.subr.mxu0 0.0
    %119 = vmatpush1.msra.mxu0 0.0
    %120 = vmatprep.mubr.f32.mxu0 0.0
    %v121 = vand.u32 %v47, 4294901760
    %v122 = vsub.f32 %v47, %v121
    %v123 = vand.u32 %v122, 4294901760
    %v124 = vsub.f32 %v122, %v123
    %v125 = vand.u32 %v124, 4294901760
    %126 = vmatmul.mubr.f32.gmra.mrb[0].mxu0 %v125
    %v127 = vpop.f32.mrb[0].mxu0
    %v128 = vadd.f32 0.0, %v127
    %v129 = vpop.f32.mrb[0].mxu0
    %130 = vdwg.mxu0
    %131 = vmatprep.subr.mxu0 0.0
    %v132 = vand.u32 %v42, 4294901760
    %v133 = vsub.f32 %v42, %v132
    %v134 = vand.u32 %v133, 4294901760
    %v135 = vsub.f32 %v133, %v134
    %v136 = vand.u32 %v135, 4294901760
    %137 = vmatpush1.msra.mxu0 %v136
    %138 = vmatprep.subr.mxu0 0.0
    %v139 = vand.u32 %v43, 4294901760
    %v140 = vsub.f32 %v43, %v139
    %v141 = vand.u32 %v140, 4294901760
    %v142 = vsub.f32 %v140, %v141
    %v143 = vand.u32 %v142, 4294901760
    %144 = vmatpush1.msra.mxu0 %v143
    %145 = vmatprep.subr.mxu0 0.0
    %v146 = vand.u32 %v51, 4294901760
    %v147 = vsub.f32 %v51, %v146
    %v148 = vand.u32 %v147, 4294901760
    %v149 = vsub.f32 %v147, %v148
    %v150 = vand.u32 %v149, 4294901760
    %151 = vmatpush1.msra.mxu0 %v150
    %152 = vmatprep.subr.mxu0 0.0
    %153 = vmatpush1.msra.mxu0 0.0
    %154 = vmatprep.subr.mxu0 0.0
    %155 = vmatpush1.msra.mxu0 0.0
    %156 = vmatprep.subr.mxu0 0.0
    %157 = vmatpush1.msra.mxu0 0.0
    %158 = vmatprep.subr.mxu0 0.0
    %159 = vmatpush1.msra.mxu0 0.0
    %160 = vmatprep.subr.mxu0 0.0
    %161 = vmatpush1.msra.mxu0 0.0
    %162 = vmatprep.subr.mxu0 0.0
    %163 = vmatpush1.msra.mxu0 0.0
    %164 = vmatprep.subr.mxu0 0.0
    %165 = vmatpush1.msra.mxu0 0.0
    %166 = vmatprep.subr.mxu0 0.0
    %167 = vmatpush1.msra.mxu0 0.0
    %168 = vmatprep.subr.mxu0 0.0
    %169 = vmatpush1.msra.mxu0 0.0
    %170 = vmatprep.subr.mxu0 0.0
    %171 = vmatpush1.msra.mxu0 0.0
    %172 = vmatprep.subr.mxu0 0.0
    %173 = vmatpush1.msra.mxu0 0.0
    %174 = vmatprep.subr.mxu0 0.0
    %175 = vmatpush1.msra.mxu0 0.0
    %176 = vmatprep.subr.mxu0 0.0
    %177 = vmatpush1.msra.mxu0 0.0
    %178 = vmatprep.subr.mxu0 0.0
    %179 = vmatpush1.msra.mxu0 0.0
    %180 = vmatprep.subr.mxu0 0.0
    %181 = vmatpush1.msra.mxu0 0.0
    %182 = vmatprep.subr.mxu0 0.0
    %183 = vmatpush1.msra.mxu0 0.0
    %184 = vmatprep.subr.mxu0 0.0
    %185 = vmatpush1.msra.mxu0 0.0
    %186 = vmatprep.subr.mxu0 0.0
    %187 = vmatpush1.msra.mxu0 0.0
    %188 = vmatprep.subr.mxu0 0.0
    %189 = vmatpush1.msra.mxu0 0.0
    %190 = vmatprep.subr.mxu0 0.0
    %191 = vmatpush1.msra.mxu0 0.0
    %192 = vmatprep.subr.mxu0 0.0
    %193 = vmatpush1.msra.mxu0 0.0
    %194 = vmatprep.subr.mxu0 0.0
    %195 = vmatpush1.msra.mxu0 0.0
    %196 = vmatprep.subr.mxu0 0.0
    %197 = vmatpush1.msra.mxu0 0.0
    %198 = vmatprep.subr.mxu0 0.0
    %199 = vmatpush1.msra.mxu0 0.0
    %200 = vmatprep.subr.mxu0 0.0
    %201 = vmatpush1.msra.mxu0 0.0
    %202 = vmatprep.subr.mxu0 0.0
    %203 = vmatpush1.msra.mxu0 0.0
    %204 = vmatprep.subr.mxu0 0.0
    %205 = vmatpush1.msra.mxu0 0.0
    %206 = vmatprep.subr.mxu0 0.0
    %207 = vmatpush1.msra.mxu0 0.0
    %208 = vmatprep.subr.mxu0 0.0
    %209 = vmatpush1.msra.mxu0 0.0
    %210 = vmatprep.mubr.f32.mxu0 0.0
    %v211 = vand.u32 %v47, 4294901760
    %212 = vmatmul.mubr.f32.gmra.mrb[0].mxu0 %v211
    %v213 = vpop.f32.mrb[0].mxu0
    %v214 = vadd.f32 %v128, %v213
    %v215 = vpop.f32.mrb[0].mxu0
    %216 = vdwg.mxu0
    %217 = vmatprep.subr.mxu0 0.0
    %v218 = vand.u32 %v42, 4294901760
    %v219 = vsub.f32 %v42, %v218
    %220 = vmatpush1.msra.mxu0 %v219
    %221 = vmatprep.subr.mxu0 0.0
    %v222 = vand.u32 %v43, 4294901760
    %v223 = vsub.f32 %v43, %v222
    %224 = vmatpush1.msra.mxu0 %v223
    %225 = vmatprep.subr.mxu0 0.0
    %v226 = vand.u32 %v51, 4294901760
    %v227 = vsub.f32 %v51, %v226
    %228 = vmatpush1.msra.mxu0 %v227
    %229 = vmatprep.subr.mxu0 0.0
    %230 = vmatpush1.msra.mxu0 0.0
    %231 = vmatprep.subr.mxu0 0.0
    %232 = vmatpush1.msra.mxu0 0.0
    %233 = vmatprep.subr.mxu0 0.0
    %234 = vmatpush1.msra.mxu0 0.0
    %235 = vmatprep.subr.mxu0 0.0
    %236 = vmatpush1.msra.mxu0 0.0
    %237 = vmatprep.subr.mxu0 0.0
    %238 = vmatpush1.msra.mxu0 0.0
    %239 = vmatprep.subr.mxu0 0.0
    %240 = vmatpush1.msra.mxu0 0.0
    %241 = vmatprep.subr.mxu0 0.0
    %242 = vmatpush1.msra.mxu0 0.0
    %243 = vmatprep.subr.mxu0 0.0
    %244 = vmatpush1.msra.mxu0 0.0
    %245 = vmatprep.subr.mxu0 0.0
    %246 = vmatpush1.msra.mxu0 0.0
    %247 = vmatprep.subr.mxu0 0.0
    %248 = vmatpush1.msra.mxu0 0.0
    %249 = vmatprep.subr.mxu0 0.0
    %250 = vmatpush1.msra.mxu0 0.0
    %251 = vmatprep.subr.mxu0 0.0
    %252 = vmatpush1.msra.mxu0 0.0
    %253 = vmatprep.subr.mxu0 0.0
    %254 = vmatpush1.msra.mxu0 0.0
    %255 = vmatprep.subr.mxu0 0.0
    %256 = vmatpush1.msra.mxu0 0.0
    %257 = vmatprep.subr.mxu0 0.0
    %258 = vmatpush1.msra.mxu0 0.0
    %259 = vmatprep.subr.mxu0 0.0
    %260 = vmatpush1.msra.mxu0 0.0
    %261 = vmatprep.subr.mxu0 0.0
    %262 = vmatpush1.msra.mxu0 0.0
    %263 = vmatprep.subr.mxu0 0.0
    %264 = vmatpush1.msra.mxu0 0.0
    %265 = vmatprep.subr.mxu0 0.0
    %266 = vmatpush1.msra.mxu0 0.0
    %267 = vmatprep.subr.mxu0 0.0
    %268 = vmatpush1.msra.mxu0 0.0
    %269 = vmatprep.subr.mxu0 0.0
    %270 = vmatpush1.msra.mxu0 0.0
    %271 = vmatprep.subr.mxu0 0.0
    %272 = vmatpush1.msra.mxu0 0.0
    %273 = vmatprep.subr.mxu0 0.0
    %274 = vmatpush1.msra.mxu0 0.0
    %275 = vmatprep.subr.mxu0 0.0
    %276 = vmatpush1.msra.mxu0 0.0
    %277 = vmatprep.subr.mxu0 0.0
    %278 = vmatpush1.msra.mxu0 0.0
    %279 = vmatprep.subr.mxu0 0.0
    %280 = vmatpush1.msra.mxu0 0.0
    %281 = vmatprep.subr.mxu0 0.0
    %282 = vmatpush1.msra.mxu0 0.0
    %283 = vmatprep.subr.mxu0 0.0
    %284 = vmatpush1.msra.mxu0 0.0
    %285 = vmatprep.subr.mxu0 0.0
    %286 = vmatpush1.msra.mxu0 0.0
    %287 = vmatprep.mubr.f32.mxu0 0.0
    %v288 = vand.u32 %v47, 4294901760
    %v289 = vsub.f32 %v47, %v288
    %290 = vmatmul.mubr.f32.gmra.mrb[0].mxu0 %v289
    %v291 = vpop.f32.mrb[0].mxu0
    %v292 = vadd.f32 %v214, %v291
    %v293 = vpop.f32.mrb[0].mxu0
    %294 = vdwg.mxu0
    %295 = vmatprep.subr.mxu0 0.0
    %v296 = vand.u32 %v42, 4294901760
    %297 = vmatpush1.msra.mxu0 %v296
    %298 = vmatprep.subr.mxu0 0.0
    %v299 = vand.u32 %v43, 4294901760
    %300 = vmatpush1.msra.mxu0 %v299
    %301 = vmatprep.subr.mxu0 0.0
    %v302 = vand.u32 %v51, 4294901760
    %303 = vmatpush1.msra.mxu0 %v302
    %304 = vmatprep.subr.mxu0 0.0
    %305 = vmatpush1.msra.mxu0 0.0
    %306 = vmatprep.subr.mxu0 0.0
    %307 = vmatpush1.msra.mxu0 0.0
    %308 = vmatprep.subr.mxu0 0.0
    %309 = vmatpush1.msra.mxu0 0.0
    %310 = vmatprep.subr.mxu0 0.0
    %311 = vmatpush1.msra.mxu0 0.0
    %312 = vmatprep.subr.mxu0 0.0
    %313 = vmatpush1.msra.mxu0 0.0
    %314 = vmatprep.subr.mxu0 0.0
    %315 = vmatpush1.msra.mxu0 0.0
    %316 = vmatprep.subr.mxu0 0.0
    %317 = vmatpush1.msra.mxu0 0.0
    %318 = vmatprep.subr.mxu0 0.0
    %319 = vmatpush1.msra.mxu0 0.0
    %320 = vmatprep.subr.mxu0 0.0
    %321 = vmatpush1.msra.mxu0 0.0
    %322 = vmatprep.subr.mxu0 0.0
    %323 = vmatpush1.msra.mxu0 0.0
    %324 = vmatprep.subr.mxu0 0.0
    %325 = vmatpush1.msra.mxu0 0.0
    %326 = vmatprep.subr.mxu0 0.0
    %327 = vmatpush1.msra.mxu0 0.0
    %328 = vmatprep.subr.mxu0 0.0
    %329 = vmatpush1.msra.mxu0 0.0
    %330 = vmatprep.subr.mxu0 0.0
    %331 = vmatpush1.msra.mxu0 0.0
    %332 = vmatprep.subr.mxu0 0.0
    %333 = vmatpush1.msra.mxu0 0.0
    %334 = vmatprep.subr.mxu0 0.0
    %335 = vmatpush1.msra.mxu0 0.0
    %336 = vmatprep.subr.mxu0 0.0
    %337 = vmatpush1.msra.mxu0 0.0
    %338 = vmatprep.subr.mxu0 0.0
    %339 = vmatpush1.msra.mxu0 0.0
    %340 = vmatprep.subr.mxu0 0.0
    %341 = vmatpush1.msra.mxu0 0.0
    %342 = vmatprep.subr.mxu0 0.0
    %343 = vmatpush1.msra.mxu0 0.0
    %344 = vmatprep.subr.mxu0 0.0
    %345 = vmatpush1.msra.mxu0 0.0
    %346 = vmatprep.subr.mxu0 0.0
    %347 = vmatpush1.msra.mxu0 0.0
    %348 = vmatprep.subr.mxu0 0.0
    %349 = vmatpush1.msra.mxu0 0.0
    %350 = vmatprep.subr.mxu0 0.0
    %351 = vmatpush1.msra.mxu0 0.0
    %352 = vmatprep.subr.mxu0 0.0
    %353 = vmatpush1.msra.mxu0 0.0
    %354 = vmatprep.subr.mxu0 0.0
    %355 = vmatpush1.msra.mxu0 0.0
    %356 = vmatprep.subr.mxu0 0.0
    %357 = vmatpush1.msra.mxu0 0.0
    %358 = vmatprep.subr.mxu0 0.0
    %359 = vmatpush1.msra.mxu0 0.0
    %360 = vmatprep.subr.mxu0 0.0
    %361 = vmatpush1.msra.mxu0 0.0
    %362 = vmatprep.mubr.f32.mxu0 0.0
    %v363 = vand.u32 %v47, 4294901760
    %v364 = vsub.f32 %v47, %v363
    %v365 = vand.u32 %v364, 4294901760
    %366 = vmatmul.mubr.f32.gmra.mrb[0].mxu0 %v365
    %v367 = vpop.f32.mrb[0].mxu0
    %v368 = vadd.f32 %v292, %v367
    %v369 = vpop.f32.mrb[0].mxu0
    %370 = vdwg.mxu0
    %371 = vmatprep.subr.mxu0 0.0
    %v372 = vand.u32 %v42, 4294901760
    %v373 = vsub.f32 %v42, %v372
    %v374 = vand.u32 %v373, 4294901760
    %375 = vmatpush1.msra.mxu0 %v374
    %376 = vmatprep.subr.mxu0 0.0
    %v377 = vand.u32 %v43, 4294901760
    %v378 = vsub.f32 %v43, %v377
    %v379 = vand.u32 %v378, 4294901760
    %380 = vmatpush1.msra.mxu0 %v379
    %381 = vmatprep.subr.mxu0 0.0
    %v382 = vand.u32 %v51, 4294901760
    %v383 = vsub.f32 %v51, %v382
    %v384 = vand.u32 %v383, 4294901760
    %385 = vmatpush1.msra.mxu0 %v384
    %386 = vmatprep.subr.mxu0 0.0
    %387 = vmatpush1.msra.mxu0 0.0
    %388 = vmatprep.subr.mxu0 0.0
    %389 = vmatpush1.msra.mxu0 0.0
    %390 = vmatprep.subr.mxu0 0.0
    %391 = vmatpush1.msra.mxu0 0.0
    %392 = vmatprep.subr.mxu0 0.0
    %393 = vmatpush1.msra.mxu0 0.0
    %394 = vmatprep.subr.mxu0 0.0
    %395 = vmatpush1.msra.mxu0 0.0
    %396 = vmatprep.subr.mxu0 0.0
    %397 = vmatpush1.msra.mxu0 0.0
    %398 = vmatprep.subr.mxu0 0.0
    %399 = vmatpush1.msra.mxu0 0.0
    %400 = vmatprep.subr.mxu0 0.0
    %401 = vmatpush1.msra.mxu0 0.0
    %402 = vmatprep.subr.mxu0 0.0
    %403 = vmatpush1.msra.mxu0 0.0
    %404 = vmatprep.subr.mxu0 0.0
    %405 = vmatpush1.msra.mxu0 0.0
    %406 = vmatprep.subr.mxu0 0.0
    %407 = vmatpush1.msra.mxu0 0.0
    %408 = vmatprep.subr.mxu0 0.0
    %409 = vmatpush1.msra.mxu0 0.0
    %410 = vmatprep.subr.mxu0 0.0
    %411 = vmatpush1.msra.mxu0 0.0
    %412 = vmatprep.subr.mxu0 0.0
    %413 = vmatpush1.msra.mxu0 0.0
    %414 = vmatprep.subr.mxu0 0.0
    %415 = vmatpush1.msra.mxu0 0.0
    %416 = vmatprep.subr.mxu0 0.0
    %417 = vmatpush1.msra.mxu0 0.0
    %418 = vmatprep.subr.mxu0 0.0
    %419 = vmatpush1.msra.mxu0 0.0
    %420 = vmatprep.subr.mxu0 0.0
    %421 = vmatpush1.msra.mxu0 0.0
    %422 = vmatprep.subr.mxu0 0.0
    %423 = vmatpush1.msra.mxu0 0.0
    %424 = vmatprep.subr.mxu0 0.0
    %425 = vmatpush1.msra.mxu0 0.0
    %426 = vmatprep.subr.mxu0 0.0
    %427 = vmatpush1.msra.mxu0 0.0
    %428 = vmatprep.subr.mxu0 0.0
    %429 = vmatpush1.msra.mxu0 0.0
    %430 = vmatprep.subr.mxu0 0.0
    %431 = vmatpush1.msra.mxu0 0.0
    %432 = vmatprep.subr.mxu0 0.0
    %433 = vmatpush1.msra.mxu0 0.0
    %434 = vmatprep.subr.mxu0 0.0
    %435 = vmatpush1.msra.mxu0 0.0
    %436 = vmatprep.subr.mxu0 0.0
    %437 = vmatpush1.msra.mxu0 0.0
    %438 = vmatprep.subr.mxu0 0.0
    %439 = vmatpush1.msra.mxu0 0.0
    %440 = vmatprep.subr.mxu0 0.0
    %441 = vmatpush1.msra.mxu0 0.0
    %442 = vmatprep.subr.mxu0 0.0
    %443 = vmatpush1.msra.mxu0 0.0
    %444 = vmatprep.mubr.f32.mxu0 0.0
    %v445 = vand.u32 %v47, 4294901760
    %446 = vmatmul.mubr.f32.gmra.mrb[0].mxu0 %v445
    %v447 = vpop.f32.mrb[0].mxu0
    %v448 = vadd.f32 %v368, %v447
    %v449 = vpop.f32.mrb[0].mxu0
    %450 = vdwg.mxu0
    %451 = vmatprep.subr.mxu0 0.0
    %v452 = vand.u32 %v42, 4294901760
    %453 = vmatpush1.msra.mxu0 %v452
    %454 = vmatprep.subr.mxu0 0.0
    %v455 = vand.u32 %v43, 4294901760
    %456 = vmatpush1.msra.mxu0 %v455
    %457 = vmatprep.subr.mxu0 0.0
    %v458 = vand.u32 %v51, 4294901760
    %459 = vmatpush1.msra.mxu0 %v458
    %460 = vmatprep.subr.mxu0 0.0
    %461 = vmatpush1.msra.mxu0 0.0
    %462 = vmatprep.subr.mxu0 0.0
    %463 = vmatpush1.msra.mxu0 0.0
    %464 = vmatprep.subr.mxu0 0.0
    %465 = vmatpush1.msra.mxu0 0.0
    %466 = vmatprep.subr.mxu0 0.0
    %467 = vmatpush1.msra.mxu0 0.0
    %468 = vmatprep.subr.mxu0 0.0
    %469 = vmatpush1.msra.mxu0 0.0
    %470 = vmatprep.subr.mxu0 0.0
    %471 = vmatpush1.msra.mxu0 0.0
    %472 = vmatprep.subr.mxu0 0.0
    %473 = vmatpush1.msra.mxu0 0.0
    %474 = vmatprep.subr.mxu0 0.0
    %475 = vmatpush1.msra.mxu0 0.0
    %476 = vmatprep.subr.mxu0 0.0
    %477 = vmatpush1.msra.mxu0 0.0
    %478 = vmatprep.subr.mxu0 0.0
    %479 = vmatpush1.msra.mxu0 0.0
    %480 = vmatprep.subr.mxu0 0.0
    %481 = vmatpush1.msra.mxu0 0.0
    %482 = vmatprep.subr.mxu0 0.0
    %483 = vmatpush1.msra.mxu0 0.0
    %484 = vmatprep.subr.mxu0 0.0
    %485 = vmatpush1.msra.mxu0 0.0
    %486 = vmatprep.subr.mxu0 0.0
    %487 = vmatpush1.msra.mxu0 0.0
    %488 = vmatprep.subr.mxu0 0.0
    %489 = vmatpush1.msra.mxu0 0.0
    %490 = vmatprep.subr.mxu0 0.0
    %491 = vmatpush1.msra.mxu0 0.0
    %492 = vmatprep.subr.mxu0 0.0
    %493 = vmatpush1.msra.mxu0 0.0
    %494 = vmatprep.subr.mxu0 0.0
    %495 = vmatpush1.msra.mxu0 0.0
    %496 = vmatprep.subr.mxu0 0.0
    %497 = vmatpush1.msra.mxu0 0.0
    %498 = vmatprep.subr.mxu0 0.0
    %499 = vmatpush1.msra.mxu0 0.0
    %500 = vmatprep.subr.mxu0 0.0
    %501 = vmatpush1.msra.mxu0 0.0
    %502 = vmatprep.subr.mxu0 0.0
    %503 = vmatpush1.msra.mxu0 0.0
    %504 = vmatprep.subr.mxu0 0.0
    %505 = vmatpush1.msra.mxu0 0.0
    %506 = vmatprep.subr.mxu0 0.0
    %507 = vmatpush1.msra.mxu0 0.0
    %508 = vmatprep.subr.mxu0 0.0
    %509 = vmatpush1.msra.mxu0 0.0
    %510 = vmatprep.subr.mxu0 0.0
    %511 = vmatpush1.msra.mxu0 0.0
    %512 = vmatprep.subr.mxu0 0.0
    %513 = vmatpush1.msra.mxu0 0.0
    %514 = vmatprep.subr.mxu0 0.0
    %515 = vmatpush1.msra.mxu0 0.0
    %516 = vmatprep.subr.mxu0 0.0
    %517 = vmatpush1.msra.mxu0 0.0
    %518 = vmatprep.mubr.f32.mxu0 0.0
    %v519 = vand.u32 %v47, 4294901760
    %520 = vmatmul.mubr.f32.gmra.mrb[0].mxu0 %v519
    %v521 = vpop.f32.mrb[0].mxu0
    %v522 = vadd.f32 %v448, %v521
    %v523 = vpop.f32.mrb[0].mxu0
    %524 = vdwg.mxu0
    %v525 = vmul.f32 %v522, %v522
    %v526 = vld [vmem:[%s2] sm:$0x1]
    %v528 = vlaneseq
    %v529 = vshrl.u32 %v528, 7
    %v530 = vsub.s32 0, %v529
    %v531 = vrot.slane %v526, %v530
    %v533 = vmul.f32 %v525, %v531
    %v534 = vmul.f32 %v533, 1.442695
    %v535 = vpow.pop %v534
    %536 = vst [vmem:[#allocation7] sm:$0x3] %v535
    // Predicated region
    $region22: #{tpu_custom_call.1} parent=1 // pred_check
      _
    $region23: #{tpu_custom_call.1} parent=1 // pred_check_branch
      %538 = sbr.rel (0) target = $region25
    $region24: #{tpu_custom_call.1} parent=1 // pred_region
      %s540 = ssub.s32 32, 32
      %541 = vsyncadd [#allocation4], %s540
      %s543 = sshll.u32 [#allocation7], 4
      %s544 = int_to_ptr.vmem [resolvable:$true] %s543
      %546 = dma.vmem_to_hbm [thread:$0]  %s544, 32, %s3, [#allocation4]
    $region25: #{tpu_custom_call.1} parent=1 // pred_fallthru
      _
    // Predicated region
    $region26: #{tpu_custom_call.1} parent=1 // pred_check
      _
    $region27: #{tpu_custom_call.1} parent=1 // pred_check_branch
      %548 = sbr.rel (0) target = $region29
    $region28: #{tpu_custom_call.1} parent=1 // pred_region
      %549 = dma.done [#allocation4], 32
    $region29: #{tpu_custom_call.1} parent=1 // pred_fallthru
      _
    %550 = vsyncpa [#allocation3], 1
    %551 = vsyncpa [#allocation6], 1
    %552 = vsyncpa [#allocation4], 1

</llo_original>
